<compile_context>
chip_gen: v6e
topology: v6e:2x2x1
jax: 0.10.0
libtpu: 0.0.40
codegen_flags: <defaults>
</compile_context>

<pallas_src>
import jax
import jax.numpy as jnp
from jax.experimental import pallas as pl
from jax.experimental.pallas import tpu as pltpu

_I32_MAX = 2**31 - 1


def sampler_kernel(logits_ref, temp_ref, gumbel_ref, tok_ref,
                   gval_ref, gidx_ref, sval_ref, sidx_ref):
    """One (batch_block, vocab_chunk) grid step.

    logits_ref: (bt, cv) input dtype, temp_ref: (bt, 1) f32,
    gumbel_ref: (bt, cv) f32, tok_ref: (bt, 1) i32 (written on last chunk).
    Scratch: running (value, index) pairs for the greedy and sampled argmax.
    """
    k = pl.program_id(1)
    nk = pl.num_programs(1)
    bt, cv = logits_ref.shape

    @pl.when(k == 0)
    def _init():
        gval_ref[...] = jnp.full(gval_ref.shape, -jnp.inf, jnp.float32)
        gidx_ref[...] = jnp.zeros(gidx_ref.shape, jnp.int32)
        sval_ref[...] = jnp.full(sval_ref.shape, -jnp.inf, jnp.float32)
        sidx_ref[...] = jnp.zeros(sidx_ref.shape, jnp.int32)

    temp = temp_ref[...]                                   # (bt, 1) f32
    # Per-row reciprocal (tiny) instead of a vocab-wide divide.  temp==0 rows
    # get inv_t == 1.0 exactly, so their "scaled" logits equal the raw logits
    # and the greedy argmax below is exact for them.
    inv_t = 1.0 / jnp.where(temp == 0.0, 1.0, temp)

    scaled = logits_ref[...].astype(jnp.float32) * inv_t   # (bt, cv) f32
    gscore = scaled + gumbel_ref[...]                      # Gumbel-max score

    col = k * cv + jax.lax.broadcasted_iota(jnp.int32, (bt, cv), 1)

    # Running first-occurrence argmax for the greedy branch.
    cmax = jnp.max(scaled, axis=-1, keepdims=True)
    cidx = jnp.min(jnp.where(scaled == cmax, col, _I32_MAX),
                   axis=-1, keepdims=True)
    gbetter = cmax > gval_ref[...]          # strict ">" keeps first occurrence
    gidx_ref[...] = jnp.where(gbetter, cidx, gidx_ref[...])
    gval_ref[...] = jnp.where(gbetter, cmax, gval_ref[...])

    # Running first-occurrence argmax for the sampled (Gumbel-perturbed) branch.
    smax = jnp.max(gscore, axis=-1, keepdims=True)
    sidx = jnp.min(jnp.where(gscore == smax, col, _I32_MAX),
                   axis=-1, keepdims=True)
    sbetter = smax > sval_ref[...]
    sidx_ref[...] = jnp.where(sbetter, sidx, sidx_ref[...])
    sval_ref[...] = jnp.where(sbetter, smax, sval_ref[...])

    @pl.when(k == nk - 1)
    def _finalize():
        tok_ref[...] = jnp.where(temp == 0.0, gidx_ref[...], sidx_ref[...])


def sampler(logits, temperatures, *, key=None, logits_k=0,
            block_rows=16, block_vocab=None):
    """Pallas equivalent of Sampler.forward (logits_k == 0 path)."""
    B, V = logits.shape
    if key is None:
        key = jax.random.PRNGKey(0)

    block_rows = min(block_rows, B)
    assert B % block_rows == 0, "batch must tile evenly into block_rows"

    if block_vocab is None:
        block_vocab = 2048 if (V > 2048 and V % 2048 == 0) else V
    if V % block_vocab != 0:
        block_vocab = V
    num_row_blocks = B // block_rows
    num_vocab_chunks = V // block_vocab

    temps2d = temperatures.astype(jnp.float32).reshape(B, 1)
    # -log(Exp(1)) == Gumbel(0, 1); drawn host-side (see module docstring).
    gumbel = jax.random.gumbel(key, (B, V), dtype=jnp.float32)

    tokens2d = pl.pallas_call(
        sampler_kernel,
        out_shape=jax.ShapeDtypeStruct((B, 1), jnp.int32),
        grid_spec=pltpu.PrefetchScalarGridSpec(
            num_scalar_prefetch=0,
            grid=(num_row_blocks, num_vocab_chunks),
            in_specs=[
                pl.BlockSpec((block_rows, block_vocab), lambda i, k: (i, k)),
                pl.BlockSpec((block_rows, 1), lambda i, k: (i, 0)),
                pl.BlockSpec((block_rows, block_vocab), lambda i, k: (i, k)),
            ],
            out_specs=pl.BlockSpec((block_rows, 1), lambda i, k: (i, 0)),
            scratch_shapes=[
                pltpu.VMEM((block_rows, 1), jnp.float32),  # greedy running max
                pltpu.VMEM((block_rows, 1), jnp.int32),    # greedy running idx
                pltpu.VMEM((block_rows, 1), jnp.float32),  # sampled running max
                pltpu.VMEM((block_rows, 1), jnp.int32),    # sampled running idx
            ],
        ),
        compiler_params=pltpu.CompilerParams(
            # batch axis is independent (shards across v7x's 2 TCs);
            # vocab axis is the reduction -> last + "arbitrary".
            dimension_semantics=("parallel", "arbitrary"),
        ),
    )(logits, temps2d, gumbel)

    tokens = tokens2d[:, 0]
    if logits_k == 0:
        return tokens
    # TODO(synk): logits_k != 0 path (torch.topk / torch.multinomial + gather)
    # not implemented as a Pallas kernel here.
    raise NotImplementedError("logits_k != 0 path not implemented")


if __name__ == "__main__":
    key = jax.random.PRNGKey(0)
    k_logits, k_noise = jax.random.split(key)

    B, V = 16, 256
    logits = (jax.random.normal(k_logits, (B, V), dtype=jnp.float32) * 4.0).astype(
        jnp.bfloat16
    )  # forward casts to float32 internally, like logits.to(torch.float)
    temperatures = jnp.tile(jnp.array([0.0, 0.5, 1.0, 2.0], jnp.float32), 4)  # (16,)

    # block_vocab=128 -> 2 vocab chunks, exercising the online-argmax reduction.
    tokens = sampler(logits, temperatures, key=k_noise,
                     block_rows=16, block_vocab=128)
    tokens = jax.block_until_ready(tokens)

    # sanity: rows with temperature == 0 must equal plain argmax (greedy)
    greedy_ref = jnp.argmax(logits.astype(jnp.float32), axis=-1).astype(jnp.int32)
    zero_rows = temperatures == 0.0
    assert tokens.shape == (B,) and tokens.dtype == jnp.int32
    assert bool(jnp.all(jnp.where(zero_rows, tokens == greedy_ref, True)))
    assert bool(jnp.all((tokens >= 0) & (tokens < V)))

    print("KERNEL_OK")
</pallas_src>

<mosaic_0001>
module attributes {stable_mosaic.version = 11 : i64} {
  func.func @sampler_kernel(%arg0: i32, %arg1: i32, %arg2: memref<16x128xbf16, #tpu.memory_space<vmem>>, %arg3: memref<16x1xf32, #tpu.memory_space<vmem>>, %arg4: memref<16x128xf32, #tpu.memory_space<vmem>>, %arg5: memref<16x1xi32, #tpu.memory_space<vmem>>, %arg6: memref<16x1xf32, #tpu.memory_space<vmem>>, %arg7: memref<16x1xi32, #tpu.memory_space<vmem>>, %arg8: memref<16x1xf32, #tpu.memory_space<vmem>>, %arg9: memref<16x1xi32, #tpu.memory_space<vmem>>) attributes {dimension_semantics = [#tpu.dimension_semantics<parallel>, #tpu.dimension_semantics<arbitrary>], iteration_bounds = array<i64: 1, 2>, scalar_prefetch = 0 : i64, scratch_operands = 4 : i64, tpu.core_type = #tpu.core_type<tc>, window_params = [{transform_indices = @transform_0, window_bounds = array<i64: 16, 128>}, {transform_indices = @transform_1, window_bounds = array<i64: 16, 1>}, {transform_indices = @transform_2, window_bounds = array<i64: 16, 128>}, {transform_indices = @transform_3, window_bounds = array<i64: 16, 1>}]} {
    %c0_i32 = arith.constant 0 : i32
    %0 = arith.cmpi eq, %arg1, %c0_i32 : i32
    %1 = arith.extui %0 : i1 to i32
    %c0_i32_0 = arith.constant 0 : i32
    %2 = arith.cmpi ne, %1, %c0_i32_0 : i32
    scf.if %2 {
      %cst_34 = arith.constant 0xFF800000 : f32
      %55 = vector.broadcast %cst_34 : f32 to vector<16x1xf32>
      %c0_35 = arith.constant 0 : index
      %c0_36 = arith.constant 0 : index
      %56 = vector.load %arg6[%c0_35, %c0_36] : memref<16x1xf32, #tpu.memory_space<vmem>>, vector<16x1xf32>
      tpu.vector_store %arg6[%c0_35, %c0_36], %55 {strides = array<i32>} : memref<16x1xf32, #tpu.memory_space<vmem>>, vector<16x1xf32>,
      %c0_i32_37 = arith.constant 0 : i32
      %57 = vector.broadcast %c0_i32_37 : i32 to vector<16x1xi32>
      %c0_38 = arith.constant 0 : index
      %c0_39 = arith.constant 0 : index
      %58 = vector.load %arg7[%c0_38, %c0_39] : memref<16x1xi32, #tpu.memory_space<vmem>>, vector<16x1xi32>
      tpu.vector_store %arg7[%c0_38, %c0_39], %57 {strides = array<i32>} : memref<16x1xi32, #tpu.memory_space<vmem>>, vector<16x1xi32>,
      %cst_40 = arith.constant 0xFF800000 : f32
      %59 = vector.broadcast %cst_40 : f32 to vector<16x1xf32>
      %c0_41 = arith.constant 0 : index
      %c0_42 = arith.constant 0 : index
      %60 = vector.load %arg8[%c0_41, %c0_42] : memref<16x1xf32, #tpu.memory_space<vmem>>, vector<16x1xf32>
      tpu.vector_store %arg8[%c0_41, %c0_42], %59 {strides = array<i32>} : memref<16x1xf32, #tpu.memory_space<vmem>>, vector<16x1xf32>,
      %c0_i32_43 = arith.constant 0 : i32
      %61 = vector.broadcast %c0_i32_43 : i32 to vector<16x1xi32>
      %c0_44 = arith.constant 0 : index
      %c0_45 = arith.constant 0 : index
      %62 = vector.load %arg9[%c0_44, %c0_45] : memref<16x1xi32, #tpu.memory_space<vmem>>, vector<16x1xi32>
      tpu.vector_store %arg9[%c0_44, %c0_45], %61 {strides = array<i32>} : memref<16x1xi32, #tpu.memory_space<vmem>>, vector<16x1xi32>,
    } else {
    }
    %c0 = arith.constant 0 : index
    %c0_1 = arith.constant 0 : index
    %3 = vector.load %arg3[%c0, %c0_1] : memref<16x1xf32, #tpu.memory_space<vmem>>, vector<16x1xf32>
    %cst = arith.constant 0.000000e+00 : f32
    %4 = vector.broadcast %cst : f32 to vector<16x1xf32>
    %5 = arith.cmpf oeq, %3, %4 : vector<16x1xf32>
    %cst_2 = arith.constant 1.000000e+00 : f32
    %6 = vector.broadcast %cst_2 : f32 to vector<16x1xf32>
    %7 = arith.select %5, %6, %3 : vector<16x1xi1>, vector<16x1xf32>
    %cst_3 = arith.constant 1.000000e+00 : f32
    %8 = vector.broadcast %cst_3 : f32 to vector<16x1xf32>
    %9 = arith.divf %8, %7 : vector<16x1xf32>
    %c0_4 = arith.constant 0 : index
    %c0_5 = arith.constant 0 : index
    %10 = vector.load %arg2[%c0_4, %c0_5] : memref<16x128xbf16, #tpu.memory_space<vmem>>, vector<16x128xbf16>
    %11 = arith.extf %10 : vector<16x128xbf16> to vector<16x128xf32>
    %12 = vector.broadcast %9 : vector<16x1xf32> to vector<16x128xf32>
    %13 = arith.mulf %11, %12 : vector<16x128xf32>
    %c0_6 = arith.constant 0 : index
    %c0_7 = arith.constant 0 : index
    %14 = vector.load %arg4[%c0_6, %c0_7] : memref<16x128xf32, #tpu.memory_space<vmem>>, vector<16x128xf32>
    %15 = arith.addf %13, %14 : vector<16x128xf32>
    %c128_i32 = arith.constant 128 : i32
    %16 = arith.muli %arg1, %c128_i32 : i32
    %17 = tpu.iota {dimensions = array<i32: 1>} : vector<16x128xi32>
    %18 = vector.broadcast %16 : i32 to vector<16x128xi32>
    %19 = arith.addi %18, %17 : vector<16x128xi32>
    %cst_8 = arith.constant dense<0xFF800000> : vector<16xf32>
    %20 = vector.multi_reduction <maximumf>, %13, %cst_8 [1] : vector<16x128xf32> to vector<16xf32>
    %21 = vector.shape_cast %20 : vector<16xf32> to vector<16x1xf32>
    %22 = vector.broadcast %21 : vector<16x1xf32> to vector<16x128xf32>
    %23 = arith.cmpf oeq, %13, %22 : vector<16x128xf32>
    %c2147483647_i32 = arith.constant 2147483647 : i32
    %24 = vector.broadcast %c2147483647_i32 : i32 to vector<16x128xi32>
    %25 = arith.select %23, %19, %24 : vector<16x128xi1>, vector<16x128xi32>
    %cst_9 = arith.constant dense<2147483647> : vector<16xi32>
    %26 = vector.multi_reduction <minsi>, %25, %cst_9 [1] : vector<16x128xi32> to vector<16xi32>
    %27 = vector.shape_cast %26 : vector<16xi32> to vector<16x1xi32>
    %c0_10 = arith.constant 0 : index
    %c0_11 = arith.constant 0 : index
    %28 = vector.load %arg6[%c0_10, %c0_11] : memref<16x1xf32, #tpu.memory_space<vmem>>, vector<16x1xf32>
    %29 = arith.cmpf ogt, %21, %28 : vector<16x1xf32>
    %c0_12 = arith.constant 0 : index
    %c0_13 = arith.constant 0 : index
    %30 = vector.load %arg7[%c0_12, %c0_13] : memref<16x1xi32, #tpu.memory_space<vmem>>, vector<16x1xi32>
    %31 = arith.select %29, %27, %30 : vector<16x1xi1>, vector<16x1xi32>
    %c0_14 = arith.constant 0 : index
    %c0_15 = arith.constant 0 : index
    %32 = vector.load %arg7[%c0_14, %c0_15] : memref<16x1xi32, #tpu.memory_space<vmem>>, vector<16x1xi32>
    tpu.vector_store %arg7[%c0_14, %c0_15], %31 {strides = array<i32>} : memref<16x1xi32, #tpu.memory_space<vmem>>, vector<16x1xi32>,
    %c0_16 = arith.constant 0 : index
    %c0_17 = arith.constant 0 : index
    %33 = vector.load %arg6[%c0_16, %c0_17] : memref<16x1xf32, #tpu.memory_space<vmem>>, vector<16x1xf32>
    %34 = arith.select %29, %21, %33 : vector<16x1xi1>, vector<16x1xf32>
    %c0_18 = arith.constant 0 : index
    %c0_19 = arith.constant 0 : index
    %35 = vector.load %arg6[%c0_18, %c0_19] : memref<16x1xf32, #tpu.memory_space<vmem>>, vector<16x1xf32>
    tpu.vector_store %arg6[%c0_18, %c0_19], %34 {strides = array<i32>} : memref<16x1xf32, #tpu.memory_space<vmem>>, vector<16x1xf32>,
    %cst_20 = arith.constant dense<0xFF800000> : vector<16xf32>
    %36 = vector.multi_reduction <maximumf>, %15, %cst_20 [1] : vector<16x128xf32> to vector<16xf32>
    %37 = vector.shape_cast %36 : vector<16xf32> to vector<16x1xf32>
    %38 = vector.broadcast %37 : vector<16x1xf32> to vector<16x128xf32>
    %39 = arith.cmpf oeq, %15, %38 : vector<16x128xf32>
    %c2147483647_i32_21 = arith.constant 2147483647 : i32
    %40 = vector.broadcast %c2147483647_i32_21 : i32 to vector<16x128xi32>
    %41 = arith.select %39, %19, %40 : vector<16x128xi1>, vector<16x128xi32>
    %cst_22 = arith.constant dense<2147483647> : vector<16xi32>
    %42 = vector.multi_reduction <minsi>, %41, %cst_22 [1] : vector<16x128xi32> to vector<16xi32>
    %43 = vector.shape_cast %42 : vector<16xi32> to vector<16x1xi32>
    %c0_23 = arith.constant 0 : index
    %c0_24 = arith.constant 0 : index
    %44 = vector.load %arg8[%c0_23, %c0_24] : memref<16x1xf32, #tpu.memory_space<vmem>>, vector<16x1xf32>
    %45 = arith.cmpf ogt, %37, %44 : vector<16x1xf32>
    %c0_25 = arith.constant 0 : index
    %c0_26 = arith.constant 0 : index
    %46 = vector.load %arg9[%c0_25, %c0_26] : memref<16x1xi32, #tpu.memory_space<vmem>>, vector<16x1xi32>
    %47 = arith.select %45, %43, %46 : vector<16x1xi1>, vector<16x1xi32>
    %c0_27 = arith.constant 0 : index
    %c0_28 = arith.constant 0 : index
    %48 = vector.load %arg9[%c0_27, %c0_28] : memref<16x1xi32, #tpu.memory_space<vmem>>, vector<16x1xi32>
    tpu.vector_store %arg9[%c0_27, %c0_28], %47 {strides = array<i32>} : memref<16x1xi32, #tpu.memory_space<vmem>>, vector<16x1xi32>,
    %c0_29 = arith.constant 0 : index
    %c0_30 = arith.constant 0 : index
    %49 = vector.load %arg8[%c0_29, %c0_30] : memref<16x1xf32, #tpu.memory_space<vmem>>, vector<16x1xf32>
    %50 = arith.select %45, %37, %49 : vector<16x1xi1>, vector<16x1xf32>
    %c0_31 = arith.constant 0 : index
    %c0_32 = arith.constant 0 : index
    %51 = vector.load %arg8[%c0_31, %c0_32] : memref<16x1xf32, #tpu.memory_space<vmem>>, vector<16x1xf32>
    tpu.vector_store %arg8[%c0_31, %c0_32], %50 {strides = array<i32>} : memref<16x1xf32, #tpu.memory_space<vmem>>, vector<16x1xf32>,
    %c1_i32 = arith.constant 1 : i32
    %52 = arith.cmpi eq, %arg1, %c1_i32 : i32
    %53 = arith.extui %52 : i1 to i32
    %c0_i32_33 = arith.constant 0 : i32
    %54 = arith.cmpi ne, %53, %c0_i32_33 : i32
    scf.if %54 {
      %cst_34 = arith.constant 0.000000e+00 : f32
      %55 = vector.broadcast %cst_34 : f32 to vector<16x1xf32>
      %56 = arith.cmpf oeq, %3, %55 : vector<16x1xf32>
      %c0_35 = arith.constant 0 : index
      %c0_36 = arith.constant 0 : index
      %57 = vector.load %arg7[%c0_35, %c0_36] : memref<16x1xi32, #tpu.memory_space<vmem>>, vector<16x1xi32>
      %c0_37 = arith.constant 0 : index
      %c0_38 = arith.constant 0 : index
      %58 = vector.load %arg9[%c0_37, %c0_38] : memref<16x1xi32, #tpu.memory_space<vmem>>, vector<16x1xi32>
      %59 = arith.select %56, %57, %58 : vector<16x1xi1>, vector<16x1xi32>
      %c0_39 = arith.constant 0 : index
      %c0_40 = arith.constant 0 : index
      %60 = vector.load %arg5[%c0_39, %c0_40] : memref<16x1xi32, #tpu.memory_space<vmem>>, vector<16x1xi32>
      tpu.vector_store %arg5[%c0_39, %c0_40], %59 {strides = array<i32>} : memref<16x1xi32, #tpu.memory_space<vmem>>, vector<16x1xi32>,
    } else {
    }
    return
  }
  func.func @transform_0(%arg0: i32, %arg1: i32) -> (i32, i32) {
    %c0_i32 = arith.constant 0 : i32
    return %arg0, %arg1 : i32, i32
  }
  func.func @transform_1(%arg0: i32, %arg1: i32) -> (i32, i32) {
    %c0_i32 = arith.constant 0 : i32
    %c0_i32_0 = arith.constant 0 : i32
    return %arg0, %c0_i32 : i32, i32
  }
  func.func @transform_2(%arg0: i32, %arg1: i32) -> (i32, i32) {
    %c0_i32 = arith.constant 0 : i32
    return %arg0, %arg1 : i32, i32
  }
  func.func @transform_3(%arg0: i32, %arg1: i32) -> (i32, i32) {
    %c0_i32 = arith.constant 0 : i32
    %c0_i32_0 = arith.constant 0 : i32
    return %arg0, %c0_i32 : i32, i32
  }
}

</mosaic_0001>

<llo_original>
// kernel: tpu_custom_call.1
$region0: #{tpu_custom_call.1}
  #allocation0 [shape = 'u32[]', space=smem, size = 0x4, offset = 0x4, fixed_abs, tag = 'smem constant byte address 0x4 - core index']
  #allocation1 [shape = 'u32[144,128]{1,0:T(1,128)}', space=vmem, size = 0x12000, scoped, tag = 'internal scratch']
  #allocation2 [shape = 'f32[16,1]{1,0:T(8,128)}', space=vmem, size = 0x2000, scoped, tag = 'scratch operand']
  #allocation3 [shape = 's32[16,1]{1,0:T(8,128)}', space=vmem, size = 0x2000, scoped, tag = 'scratch operand']
  #allocation4 [shape = 'f32[16,1]{1,0:T(8,128)}', space=vmem, size = 0x2000, scoped, tag = 'scratch operand']
  #allocation5 [shape = 's32[16,1]{1,0:T(8,128)}', space=vmem, size = 0x2000, scoped, tag = 'scratch operand']
  %s0 = inlined_call_operand.vmem [shape: bf16[16,256], index: 0, kind: input, shape index: {}]
  %s1 = inlined_call_operand.vmem [shape: f32[16,1], index: 1, kind: input, shape index: {}]
  %s2 = inlined_call_operand.hbm [shape: f32[16,256], index: 2, kind: input, shape index: {}]
  %s3 = inlined_call_operand.vmem [shape: s32[16,1], index: 3, kind: output, shape index: {}]
  %s4 = sld [smem:[#allocation0]]
  $region98: #{tpu_custom_call.1} parent=0
    _
  %s6 = ssub.s32 1, %s4
  %s7 = scalar_select 0, %s6, %s4
  $region1: #{tpu_custom_call.1} parent=0
    #allocation6 [shape = 'u8[8192]{0}', space=vmem, size = 0x2000, scoped, tag = 'input window, operand 0']
    #allocation7 [shape = 'u8[16384]{0}', space=vmem, size = 0x4000, scoped, tag = 'input window, operand 2']
    #allocation8 [shape = 's32[2]{0}', space=sflag, size = 0x8, scoped, tag = 'scoped memory for tpu_custom_call.1']
    %8 = vsyncpa [#allocation8], 0
    %s9 = scalar_lea.sflag [#allocation8], 1
    %10 = vsyncpa %s9, 0
    loop: start=0, step=1, limit=4
    $region2: #{tpu_custom_call.1} parent=1 // loop_pre_header
      _
    $region3: #{tpu_custom_call.1} parent=1 // loop_header
      %s12 = sphi 0, %s16
      %p13 = scmp.ge.s32.totalorder %s12, 4
      %s19 = sphi 0, %s31
      %s20 = sphi 0, %s27
      %s21 = sphi 0, %s19
      %s22 = sphi 0, %s20
      %s23 = sphi 0, %s21
      %s24 = sphi 0, %s22
      %s36 = sphi 0, %s38
      %s39 = sphi 0, %s36
      %s40 = sphi 0, %s39
      %s56 = sphi 0, %s40
      %s62 = sphi 0, %s64
      %s65 = sphi 0, %s62
      %s66 = sphi 0, %s65
      %s82 = sphi 0, %s66
      %s90 = sphi 0, %s92
      %s93 = sphi 0, %s90
      %s94 = sphi 0, %s93
      %s110 = sphi 0, %s94
      %s116 = sphi 0, %s118
      %s119 = sphi 0, %s116
      %s120 = sphi 0, %s119
      %s136 = sphi 0, %s120
    $region4: #{tpu_custom_call.1} parent=1 // loop_header_branch
      %15 = sbr.rel (%p13) target = $region8
    $region5: #{tpu_custom_call.1} parent=1 // loop_body
      %s17 = ssub.s32 %s12, 1
      %s18 = ssub.s32 %s12, 2
      %s25 = sadd.s32 1, %s20
      %p26 = scmp.ge.s32.totalorder %s25, 2
      %s27 = scalar_select %p26, 0, %s25
      %s28 = sadd.s32 1, %s19
      %s29 = scalar_select %p26, %s28, %s19
      %p30 = scmp.ge.s32.totalorder %s29, 1
      %s31 = scalar_select %p30, 0, %s29
      %s32 = ssub.s32 %s19, %s31
      %s33 = ssub.s32 %s20, %s27
      %s34 = sor.u32 %s32, %s33
      %p35 = scmp.eq.s32.totalorder %s34, 0
      %s37 = sadd.s32 %s36, 1
      %s38 = scalar_select %p35, %s36, %s37
      %p41 = pneg %p35
      %p42 = scmp.eq.s32.totalorder %s12, 1
      %p43 = por %p41, %p42
      %p44 = scmp.ne.s32.totalorder %s36, %s39
      %p45 = scmp.eq.s32.totalorder %s12, 0
      %p46 = por %p44, %p45
      %p47 = scmp.ne.s32.totalorder %s36, %s39
      %p48 = scmp.eq.s32.totalorder %s17, 1
      %p49 = por %p47, %p48
      %p50 = scmp.ne.s32.totalorder %s39, %s40
      %p51 = scmp.eq.s32.totalorder %s17, 0
      %p52 = por %p50, %p51
      %p53 = scmp.ne.s32.totalorder %s39, %s40
      %p54 = scmp.eq.s32.totalorder %s18, 1
      %p55 = por %p53, %p54
      %p57 = scmp.ne.s32.totalorder %s40, %s56
      %p58 = scmp.eq.s32.totalorder %s18, 0
      %p59 = por %p57, %p58
      %s60 = ssub.s32 %s19, %s31
      %p61 = scmp.eq.s32.totalorder %s60, 0
      %s63 = sadd.s32 %s62, 1
      %s64 = scalar_select %p61, %s62, %s63
      %p67 = pneg %p61
      %p68 = scmp.eq.s32.totalorder %s12, 1
      %p69 = por %p67, %p68
      %p70 = scmp.ne.s32.totalorder %s62, %s65
      %p71 = scmp.eq.s32.totalorder %s12, 0
      %p72 = por %p70, %p71
      %p73 = scmp.ne.s32.totalorder %s62, %s65
      %p74 = scmp.eq.s32.totalorder %s17, 1
      %p75 = por %p73, %p74
      %p76 = scmp.ne.s32.totalorder %s65, %s66
      %p77 = scmp.eq.s32.totalorder %s17, 0
      %p78 = por %p76, %p77
      %p79 = scmp.ne.s32.totalorder %s65, %s66
      %p80 = scmp.eq.s32.totalorder %s18, 1
      %p81 = por %p79, %p80
      %p83 = scmp.ne.s32.totalorder %s66, %s82
      %p84 = scmp.eq.s32.totalorder %s18, 0
      %p85 = por %p83, %p84
      %s86 = ssub.s32 %s19, %s31
      %s87 = ssub.s32 %s20, %s27
      %s88 = sor.u32 %s86, %s87
      %p89 = scmp.eq.s32.totalorder %s88, 0
      %s91 = sadd.s32 %s90, 1
      %s92 = scalar_select %p89, %s90, %s91
      %p95 = pneg %p89
      %p96 = scmp.eq.s32.totalorder %s12, 1
      %p97 = por %p95, %p96
      %p98 = scmp.ne.s32.totalorder %s90, %s93
      %p99 = scmp.eq.s32.totalorder %s12, 0
      %p100 = por %p98, %p99
      %p101 = scmp.ne.s32.totalorder %s90, %s93
      %p102 = scmp.eq.s32.totalorder %s17, 1
      %p103 = por %p101, %p102
      %p104 = scmp.ne.s32.totalorder %s93, %s94
      %p105 = scmp.eq.s32.totalorder %s17, 0
      %p106 = por %p104, %p105
      %p107 = scmp.ne.s32.totalorder %s93, %s94
      %p108 = scmp.eq.s32.totalorder %s18, 1
      %p109 = por %p107, %p108
      %p111 = scmp.ne.s32.totalorder %s94, %s110
      %p112 = scmp.eq.s32.totalorder %s18, 0
      %p113 = por %p111, %p112
      %s114 = ssub.s32 %s19, %s31
      %p115 = scmp.eq.s32.totalorder %s114, 0
      %s117 = sadd.s32 %s116, 1
      %s118 = scalar_select %p115, %s116, %s117
      %p121 = pneg %p115
      %p122 = scmp.eq.s32.totalorder %s12, 1
      %p123 = por %p121, %p122
      %p124 = scmp.ne.s32.totalorder %s116, %s119
      %p125 = scmp.eq.s32.totalorder %s12, 0
      %p126 = por %p124, %p125
      %p127 = scmp.ne.s32.totalorder %s116, %s119
      %p128 = scmp.eq.s32.totalorder %s17, 1
      %p129 = por %p127, %p128
      %p130 = scmp.ne.s32.totalorder %s119, %s120
      %p131 = scmp.eq.s32.totalorder %s17, 0
      %p132 = por %p130, %p131
      %p133 = scmp.ne.s32.totalorder %s119, %s120
      %p134 = scmp.eq.s32.totalorder %s18, 1
      %p135 = por %p133, %p134
      %p137 = scmp.ne.s32.totalorder %s120, %s136
      %p138 = scmp.eq.s32.totalorder %s18, 0
      %p139 = por %p137, %p138
      %p140 = scmp.le.s32.totalorder 1, %s12
      %p141 = scmp.lt.s32.totalorder %s12, 3
      %p142 = pnand %p140, %p141
      %p143 = pneg %p142
      // Predicated region
      $region9: #{tpu_custom_call.1} parent=5 // pred_check
        _
      $region10: #{tpu_custom_call.1} parent=5 // pred_check_branch
        %145 = sbr.rel (%p142) target = $region12
      $region11: #{tpu_custom_call.1} parent=5 // pred_region
        %s146 = ssub.s32 %s12, 1
        // Predicated region
        $region13: #{tpu_custom_call.1} parent=11 // pred_check
          %p147 = pneg %p78
        $region14: #{tpu_custom_call.1} parent=11 // pred_check_branch
          %149 = sbr.rel (%p147) target = $region16
        $region15: #{tpu_custom_call.1} parent=11 // pred_region
          %s150 = smul.u32 2, %s21
          %p151 = scmp.lt.s32.totalorder %s150, 1
          %s152 = scalar_select %p151, %s150, 1
          %s153 = smul.addr %s152, 8
          %s154 = scalar_lea.vmem %s1, %s153
          %s155 = smul.u32 2, %s21
        $region16: #{tpu_custom_call.1} parent=11 // pred_fallthru
          _
      $region12: #{tpu_custom_call.1} parent=5 // pred_fallthru
        _
      %p156 = scmp.lt.s32.totalorder %s12, 2
      // Predicated region
      $region17: #{tpu_custom_call.1} parent=5 // pred_check
        %p157 = pneg %p156
      $region18: #{tpu_custom_call.1} parent=5 // pred_check_branch
        %159 = sbr.rel (%p157) target = $region20
      $region19: #{tpu_custom_call.1} parent=5 // pred_region
        // Predicated region
        $region21: #{tpu_custom_call.1} parent=19 // pred_check
          %p160 = pneg %p46
        $region22: #{tpu_custom_call.1} parent=19 // pred_check_branch
          %162 = sbr.rel (%p160) target = $region24
        $region23: #{tpu_custom_call.1} parent=19 // pred_region
          %s163 = sand.u32 %s36, 1
          %s164 = sand.u32 %s36, 1
          %s165 = smul.addr %s164, 8
          %s166 = scalar_lea.vmem [#allocation6], %s165
          %s167 = smul.u32 2, %s19
          %s168 = smul.addr %s167, 2
          %s169 = sadd.s32 %s20, %s168
          %s170 = smul.addr %s169, 4
          %s171 = scalar_lea.vmem %s0, %s170
          // Predicated region
          $region25: #{tpu_custom_call.1} parent=23 // pred_check
            _
          $region26: #{tpu_custom_call.1} parent=23 // pred_check_branch
            %173 = sbr.rel (0) target = $region28
          $region27: #{tpu_custom_call.1} parent=23 // pred_region
            // Predicated region
            $region29: #{tpu_custom_call.1} parent=27 // pred_check
              _
            $region30: #{tpu_custom_call.1} parent=27 // pred_check_branch
              %175 = sbr.rel target = $region32
            $region31: #{tpu_custom_call.1} parent=27 // pred_region
              // Predicated region
              $region44: #{tpu_custom_call.1} parent=31 // pred_check
                _
              $region45: #{tpu_custom_call.1} parent=31 // pred_check_branch
                %193 = sbr.rel (0) target = $region47
              $region46: #{tpu_custom_call.1} parent=31 // pred_region
                loop: start=0, step=1, limit=1
                $region48: #{tpu_custom_call.1} parent=46 // loop_pre_header
                  _
                $region49: #{tpu_custom_call.1} parent=46 // loop_header
                  %s195 = sphi 0, %s199
                  %p196 = scmp.ge.s32.totalorder %s195, 1
                  %s200 = sphi %s171, %s171
                  %s201 = sphi %s166, %s166
                $region50: #{tpu_custom_call.1} parent=46 // loop_header_branch
                  %198 = sbr.rel (%p196) target = $region54
                $region51: #{tpu_custom_call.1} parent=46 // loop_body
                  _
                $region52: #{tpu_custom_call.1} parent=46 // loop_footer
                  %s199 = sadd.s32 1, %s195
                $region53: #{tpu_custom_call.1} parent=46 // loop_footer_branch
                  %194 = sbr.rel target = $region49
                $region54: #{tpu_custom_call.1} parent=46 // loop_exit
                  _
                %s203 = ssub.s32 16, 1
                loop: start=0, step=1, limit=1
                $region55: #{tpu_custom_call.1} parent=46 // loop_pre_header
                  _
                $region56: #{tpu_custom_call.1} parent=46 // loop_header
                  %s205 = sphi 0, %s209
                  %p206 = scmp.ge.s32.totalorder %s205, 1
                  %s210 = sphi %s171, %s171
                  %s211 = sphi %s166, %s166
                $region57: #{tpu_custom_call.1} parent=46 // loop_header_branch
                  %208 = sbr.rel (%p206) target = $region61
                $region58: #{tpu_custom_call.1} parent=46 // loop_body
                  %v212 = vld [vmem:[%s210] sm:%s203]
                  %213 = vst [vmem:[%s211] sm:%s203] %v212
                  %v214 = vld [vmem:[%s210 + $0x8] sm:%s203]
                  %215 = vst [vmem:[%s211 + $0x4] sm:%s203] %v214
                $region59: #{tpu_custom_call.1} parent=46 // loop_footer
                  %s209 = sadd.s32 1, %s205
                $region60: #{tpu_custom_call.1} parent=46 // loop_footer_branch
                  %204 = sbr.rel target = $region56
                $region61: #{tpu_custom_call.1} parent=46 // loop_exit
                  _
              $region47: #{tpu_custom_call.1} parent=31 // pred_fallthru
                _
            $region32: #{tpu_custom_call.1} parent=27 // pred_fallthru
              _
            // Predicated region
            $region33: #{tpu_custom_call.1} parent=27 // pred_check
              _
            $region34: #{tpu_custom_call.1} parent=27 // pred_check_branch
              %177 = sbr.rel (0) target = $region36
            $region35: #{tpu_custom_call.1} parent=27 // pred_region
              %s179 = ssub.s32 16, 1
              loop: start=0, step=1, limit=1
              $region37: #{tpu_custom_call.1} parent=35 // loop_pre_header
                _
              $region38: #{tpu_custom_call.1} parent=35 // loop_header
                %s181 = sphi 0, %s185
                %p182 = scmp.ge.s32.totalorder %s181, 1
                %s186 = sphi %s171, %s171
                %s187 = sphi %s166, %s166
              $region39: #{tpu_custom_call.1} parent=35 // loop_header_branch
                %184 = sbr.rel (%p182) target = $region43
              $region40: #{tpu_custom_call.1} parent=35 // loop_body
                %v188 = vld [vmem:[%s186] sm:%s179]
                %189 = vst [vmem:[%s187] sm:%s179] %v188
                %v190 = vld [vmem:[%s186 + $0x8] sm:%s179]
                %191 = vst [vmem:[%s187 + $0x4] sm:%s179] %v190
              $region41: #{tpu_custom_call.1} parent=35 // loop_footer
                %s185 = sadd.s32 1, %s181
              $region42: #{tpu_custom_call.1} parent=35 // loop_footer_branch
                %180 = sbr.rel target = $region38
              $region43: #{tpu_custom_call.1} parent=35 // loop_exit
                _
            $region36: #{tpu_custom_call.1} parent=27 // pred_fallthru
              _
          $region28: #{tpu_custom_call.1} parent=23 // pred_fallthru
            _
          %216 = vnop
        $region24: #{tpu_custom_call.1} parent=19 // pred_fallthru
          _
        // Predicated region
        $region62: #{tpu_custom_call.1} parent=19 // pred_check
          %p217 = pneg %p100
        $region63: #{tpu_custom_call.1} parent=19 // pred_check_branch
          %219 = sbr.rel (%p217) target = $region65
        $region64: #{tpu_custom_call.1} parent=19 // pred_region
          %s220 = sand.u32 %s90, 1
          %s221 = scalar_lea.sflag [#allocation8], %s220
          %s222 = sand.u32 %s90, 1
          %s223 = smul.addr %s222, 16
          %s224 = scalar_lea.vmem [#allocation7], %s223
          %s225 = smul.u32 2, %s19
          %s227 = ssub.s32 256, 256
          %228 = vsyncadd %s221, %s227
          %s229 = smul.addr %s225, 2
          %s230 = sadd.s32 %s20, %s229
          %s231 = smul.addr %s230, 128
          %s232 = scalar_lea.hbm %s2, %s231
          %s233 = sshll.u32 %s224, 4
          %s234 = int_to_ptr.vmem [resolvable:$true] %s233
          %239 = dma.hbm_to_vmem [thread:$0]  %s232, 256, %s234, %s221, 256, 128, 8
        $region65: #{tpu_custom_call.1} parent=19 // pred_fallthru
          _
      $region20: #{tpu_custom_call.1} parent=5 // pred_fallthru
        _
      %p240 = scmp.le.s32.totalorder 1, %s12
      %p241 = scmp.lt.s32.totalorder %s12, 3
      %p242 = pnand %p240, %p241
      %p243 = pneg %p242
      // Predicated region
      $region66: #{tpu_custom_call.1} parent=5 // pred_check
        _
      $region67: #{tpu_custom_call.1} parent=5 // pred_check_branch
        %245 = sbr.rel (%p242) target = $region69
      $region68: #{tpu_custom_call.1} parent=5 // pred_region
        %s246 = ssub.s32 %s12, 1
        %s247 = sand.u32 %s39, 1
        %s248 = sand.u32 %s39, 1
        %s249 = smul.addr %s248, 8
        %s250 = scalar_lea.vmem [#allocation6], %s249
        // Predicated region
        $region70: #{tpu_custom_call.1} parent=68 // pred_check
          %p251 = pneg %p52
        $region71: #{tpu_custom_call.1} parent=68 // pred_check_branch
          %253 = sbr.rel (%p251) target = $region73
        $region72: #{tpu_custom_call.1} parent=68 // pred_region
          _
        $region73: #{tpu_custom_call.1} parent=68 // pred_fallthru
          _
        %s254 = sand.u32 %s93, 1
        %s255 = scalar_lea.sflag [#allocation8], %s254
        %s256 = sand.u32 %s93, 1
        %s257 = smul.addr %s256, 16
        %s258 = scalar_lea.vmem [#allocation7], %s257
        // Predicated region
        $region74: #{tpu_custom_call.1} parent=68 // pred_check
          %p259 = pneg %p106
        $region75: #{tpu_custom_call.1} parent=68 // pred_check_branch
          %261 = sbr.rel (%p259) target = $region77
        $region76: #{tpu_custom_call.1} parent=68 // pred_region
          %262 = dma.done %s255, 256
        $region77: #{tpu_custom_call.1} parent=68 // pred_fallthru
          _
        %s263 = sand.u32 %s39, 1
        %s264 = sand.u32 %s39, 1
        %s265 = smul.addr %s264, 8
        %s266 = scalar_lea.vmem [#allocation6], %s265
        %p267 = pneg %p52
        %p268 = pneg %p49
        %s269 = smul.u32 2, %s21
        %p270 = scmp.lt.s32.totalorder %s269, 1
        %s271 = scalar_select %p270, %s269, 1
        %s272 = smul.addr %s271, 8
        %s273 = scalar_lea.vmem %s1, %s272
        %p274 = pneg %p78
        %p275 = pneg %p75
        %s276 = sand.u32 %s93, 1
        %s277 = scalar_lea.sflag [#allocation8], %s276
        %s278 = sand.u32 %s93, 1
        %s279 = smul.addr %s278, 16
        %s280 = scalar_lea.vmem [#allocation7], %s279
        %p281 = pneg %p106
        %p282 = pneg %p103
        %p283 = pneg %p132
        %p284 = pneg %p129
        %s285 = smul.u32 2, %s21
        %p286 = scmp.lt.s32.totalorder %s285, 1
        %s287 = scalar_select %p286, %s285, 1
        %s288 = smul.addr %s287, 8
        %s289 = scalar_lea.vmem %s3, %s288
        %s290 = smul.u32 2, %s21
        %s291 = smul.u32 2, %s21
        %p292 = scmp.lt.s32.totalorder %s291, 1
        %s293 = scalar_select %p292, %s291, 1
        %s294 = smul.addr %s293, 8
        %s295 = scalar_lea.vmem %s1, %s294
        %s296 = smul.u32 2, %s21
        %s297 = smul.u32 2, %s21
        %s298 = smul.u32 2, %s21
        %p299 = scmp.lt.s32.totalorder %s298, 1
        %s300 = scalar_select %p299, %s298, 1
        %s301 = smul.addr %s300, 8
        %s302 = scalar_lea.vmem %s3, %s301
        %s303 = smul.u32 2, %s21
        %p304 = scmp.eq.s32.totalorder %s22, 0
        // Predicated region
        $region78: #{tpu_custom_call.1} parent=68 // pred_check
          %p305 = pneg %p304
        $region79: #{tpu_custom_call.1} parent=68 // pred_check_branch
          %307 = sbr.rel (%p305) target = $region81
        $region80: #{tpu_custom_call.1} parent=68 // pred_region
          %vm308 = vcmask 7168
          %309 = vst.msk [vmem:[#allocation2] sm:$0xff] %vm308, -inf
          %310 = vst.msk [vmem:[#allocation2 + $0x8] sm:$0xff] %vm308, -inf
          %311 = vst.msk [vmem:[#allocation3] sm:$0xff] %vm308, 0
          %312 = vst.msk [vmem:[#allocation3 + $0x8] sm:$0xff] %vm308, 0
          %313 = vst.msk [vmem:[#allocation4] sm:$0xff] %vm308, -inf
          %314 = vst.msk [vmem:[#allocation4 + $0x8] sm:$0xff] %vm308, -inf
          %315 = vst.msk [vmem:[#allocation5] sm:$0xff] %vm308, 0
          %316 = vst.msk [vmem:[#allocation5 + $0x8] sm:$0xff] %vm308, 0
        $region81: #{tpu_custom_call.1} parent=68 // pred_fallthru
          _
        %v317 = vld [vmem:[%s295] sm:$0xff]
        %v318 = vld [vmem:[%s295 + $0x8] sm:$0xff]
        %vm319 = vcmp.eq.f32.partialorder %v317, 0.0
        %vm320 = vcmp.eq.f32.partialorder %v318, 0.0
        %v321 = vsel %vm319, 1.0, %v317
        %v322 = vsel %vm320, 1.0, %v318
        %v323 = vrcp.pop %v321
        %v324 = vmul.f32 1.0, %v323
        %v325 = vrcp.pop %v322
        %v326 = vmul.f32 1.0, %v325
        %v327 = vld [vmem:[%s250] sm:$0xf]
        %v328 = vld [vmem:[%s250 + $0x4] sm:$0xf]
        %v329 = vunpack.c.l.bf16 %v327
        %v330 = vunpack.c.l.bf16 %v328
        %332 = vset.pattern.permute.xlu0 0
        %333 = vperm.xlu0 %332, %v324
        %v334 = vpop.permute.xlu0 %333
        %337 = vset.pattern.permute.xlu0 0
        %338 = vperm.xlu0 %337, %v326
        %v339 = vpop.permute.xlu0 %338
        %v341 = vmul.f32 %v329, %v334
        %v342 = vmul.f32 %v330, %v339
        %v343 = vld [vmem:[%s258] sm:$0xff]
        %v344 = vld [vmem:[%s258 + $0x8] sm:$0xff]
        %v345 = vadd.f32 %v341, %v343
        %v346 = vadd.f32 %v342, %v344
        %s347 = smul.u32 %s22, 128
        %v348 = vlaneseq
        %v349 = vand.u32 %v348, 127
        %v350 = vstv %s347
        %v351 = vadd.s32 %v350, %v349
        %352 = vmax.xlane.f32.xlu0 %v341
        %v353 = vpop.xlane.xlu0 %352
        %354 = vmax.xlane.f32.xlu0 %v342
        %v355 = vpop.xlane.xlu0 %354
        %vm356 = vcmp.eq.f32.partialorder %v341, %v353
        %vm357 = vcmp.eq.f32.partialorder %v342, %v355
        %v358 = vsel %vm356, %v351, 2147483647
        %v359 = vsel %vm357, %v351, 2147483647
        %v360 = vand.u32 %v358, 65535
        %v361 = vshra.s32 %v358, 16
        %v362 = vcvt.s32.f32 %v360
        %v363 = vcvt.s32.f32 %v361
        %364 = vmin.xlane.f32.xlu0 %v363
        %v365 = vpop.xlane.xlu0 %364
        %vm366 = vcmp.eq.f32.partialorder %v363, %v365
        %v367 = vsel %vm366, %v362, inf
        %368 = vmin.xlane.f32.xlu0 %v367
        %v369 = vpop.xlane.xlu0 %368
        %v370 = vcvt.f32.s32 %v369
        %v371 = vcvt.f32.s32 %v365
        %v372 = vshll.u32 %v371, 16
        %v373 = vadd.s32 %v372, %v370
        %v374 = vand.u32 %v359, 65535
        %v375 = vshra.s32 %v359, 16
        %v376 = vcvt.s32.f32 %v374
        %v377 = vcvt.s32.f32 %v375
        %378 = vmin.xlane.f32.xlu0 %v377
        %v379 = vpop.xlane.xlu0 %378
        %vm380 = vcmp.eq.f32.partialorder %v377, %v379
        %v381 = vsel %vm380, %v376, inf
        %382 = vmin.xlane.f32.xlu0 %v381
        %v383 = vpop.xlane.xlu0 %382
        %v384 = vcvt.f32.s32 %v383
        %v385 = vcvt.f32.s32 %v379
        %v386 = vshll.u32 %v385, 16
        %v387 = vadd.s32 %v386, %v384
        %v388 = vld [vmem:[#allocation2] sm:$0xff]
        %v389 = vld [vmem:[#allocation2 + $0x8] sm:$0xff]
        %vm390 = vcmp.gt.f32.partialorder %v353, %v388
        %vm391 = vcmp.gt.f32.partialorder %v355, %v389
        %v392 = vld [vmem:[#allocation3] sm:$0xff]
        %v393 = vld [vmem:[#allocation3 + $0x8] sm:$0xff]
        %v394 = vsel %vm390, %v373, %v392
        %v395 = vsel %vm391, %v387, %v393
        %vm396 = vcmask 7168
        %397 = vst.msk [vmem:[#allocation3] sm:$0xff] %vm396, %v394
        %398 = vst.msk [vmem:[#allocation3 + $0x8] sm:$0xff] %vm396, %v395
        %v399 = vld [vmem:[#allocation2] sm:$0xff]
        %v400 = vld [vmem:[#allocation2 + $0x8] sm:$0xff]
        %v401 = vsel %vm390, %v353, %v399
        %v402 = vsel %vm391, %v355, %v400
        %403 = vst.msk [vmem:[#allocation2] sm:$0xff] %vm396, %v401
        %404 = vst.msk [vmem:[#allocation2 + $0x8] sm:$0xff] %vm396, %v402
        %405 = vmax.xlane.f32.xlu0 %v345
        %v406 = vpop.xlane.xlu0 %405
        %407 = vmax.xlane.f32.xlu0 %v346
        %v408 = vpop.xlane.xlu0 %407
        %vm409 = vcmp.eq.f32.partialorder %v345, %v406
        %vm410 = vcmp.eq.f32.partialorder %v346, %v408
        %v411 = vsel %vm409, %v351, 2147483647
        %v412 = vsel %vm410, %v351, 2147483647
        %v413 = vand.u32 %v411, 65535
        %v414 = vshra.s32 %v411, 16
        %v415 = vcvt.s32.f32 %v413
        %v416 = vcvt.s32.f32 %v414
        %417 = vmin.xlane.f32.xlu0 %v416
        %v418 = vpop.xlane.xlu0 %417
        %vm419 = vcmp.eq.f32.partialorder %v416, %v418
        %v420 = vsel %vm419, %v415, inf
        %421 = vmin.xlane.f32.xlu0 %v420
        %v422 = vpop.xlane.xlu0 %421
        %v423 = vcvt.f32.s32 %v422
        %v424 = vcvt.f32.s32 %v418
        %v425 = vshll.u32 %v424, 16
        %v426 = vadd.s32 %v425, %v423
        %v427 = vand.u32 %v412, 65535
        %v428 = vshra.s32 %v412, 16
        %v429 = vcvt.s32.f32 %v427
        %v430 = vcvt.s32.f32 %v428
        %431 = vmin.xlane.f32.xlu0 %v430
        %v432 = vpop.xlane.xlu0 %431
        %vm433 = vcmp.eq.f32.partialorder %v430, %v432
        %v434 = vsel %vm433, %v429, inf
        %435 = vmin.xlane.f32.xlu0 %v434
        %v436 = vpop.xlane.xlu0 %435
        %v437 = vcvt.f32.s32 %v436
        %v438 = vcvt.f32.s32 %v432
        %v439 = vshll.u32 %v438, 16
        %v440 = vadd.s32 %v439, %v437
        %v441 = vld [vmem:[#allocation4] sm:$0xff]
        %v442 = vld [vmem:[#allocation4 + $0x8] sm:$0xff]
        %vm443 = vcmp.gt.f32.partialorder %v406, %v441
        %vm444 = vcmp.gt.f32.partialorder %v408, %v442
        %v445 = vld [vmem:[#allocation5] sm:$0xff]
        %v446 = vld [vmem:[#allocation5 + $0x8] sm:$0xff]
        %v447 = vsel %vm443, %v426, %v445
        %v448 = vsel %vm444, %v440, %v446
        %449 = vst.msk [vmem:[#allocation5] sm:$0xff] %vm396, %v447
        %450 = vst.msk [vmem:[#allocation5 + $0x8] sm:$0xff] %vm396, %v448
        %v451 = vld [vmem:[#allocation4] sm:$0xff]
        %v452 = vld [vmem:[#allocation4 + $0x8] sm:$0xff]
        %v453 = vsel %vm443, %v406, %v451
        %v454 = vsel %vm444, %v408, %v452
        %455 = vst.msk [vmem:[#allocation4] sm:$0xff] %vm396, %v453
        %456 = vst.msk [vmem:[#allocation4 + $0x8] sm:$0xff] %vm396, %v454
        %p457 = scmp.eq.s32.totalorder %s22, 1
        // Predicated region
        $region82: #{tpu_custom_call.1} parent=68 // pred_check
          %p458 = pneg %p457
        $region83: #{tpu_custom_call.1} parent=68 // pred_check_branch
          %460 = sbr.rel (%p458) target = $region85
        $region84: #{tpu_custom_call.1} parent=68 // pred_region
          %v461 = vld [vmem:[#allocation3] sm:$0xff]
          %v462 = vld [vmem:[#allocation3 + $0x8] sm:$0xff]
          %v463 = vld [vmem:[#allocation5] sm:$0xff]
          %v464 = vld [vmem:[#allocation5 + $0x8] sm:$0xff]
          %v465 = vsel %vm319, %v461, %v463
          %v466 = vsel %vm320, %v462, %v464
          %467 = vst.msk [vmem:[%s302] sm:$0xff] %vm396, %v465
          %468 = vst.msk [vmem:[%s302 + $0x8] sm:$0xff] %vm396, %v466
        $region85: #{tpu_custom_call.1} parent=68 // pred_fallthru
          _
        %s469 = smul.u32 2, %s21
        %p470 = scmp.lt.s32.totalorder %s469, 1
        %s471 = scalar_select %p470, %s469, 1
        %s472 = smul.addr %s471, 8
        %s473 = scalar_lea.vmem %s3, %s472
        // Predicated region
        $region86: #{tpu_custom_call.1} parent=68 // pred_check
          %p474 = pneg %p129
        $region87: #{tpu_custom_call.1} parent=68 // pred_check_branch
          %476 = sbr.rel (%p474) target = $region89
        $region88: #{tpu_custom_call.1} parent=68 // pred_region
          %s477 = smul.u32 2, %s21
        $region89: #{tpu_custom_call.1} parent=68 // pred_fallthru
          _
        // Predicated region
        $region90: #{tpu_custom_call.1} parent=68 // pred_check
          %p478 = pneg %p129
        $region91: #{tpu_custom_call.1} parent=68 // pred_check_branch
          %480 = sbr.rel (%p478) target = $region93
        $region92: #{tpu_custom_call.1} parent=68 // pred_region
          %s481 = smul.u32 2, %s21
          %p482 = scmp.lt.s32.totalorder %s481, 1
          %s483 = scalar_select %p482, %s481, 1
          %s484 = smul.addr %s483, 8
          %s485 = scalar_lea.vmem %s3, %s484
        $region93: #{tpu_custom_call.1} parent=68 // pred_fallthru
          _
      $region69: #{tpu_custom_call.1} parent=5 // pred_fallthru
        _
      %p486 = scmp.le.s32.totalorder 2, %s12
      // Predicated region
      $region94: #{tpu_custom_call.1} parent=5 // pred_check
        %p487 = pneg %p486
      $region95: #{tpu_custom_call.1} parent=5 // pred_check_branch
        %489 = sbr.rel (%p487) target = $region97
      $region96: #{tpu_custom_call.1} parent=5 // pred_region
        %s490 = ssub.s32 %s12, 2
      $region97: #{tpu_custom_call.1} parent=5 // pred_fallthru
        _
    $region6: #{tpu_custom_call.1} parent=1 // loop_footer
      %s16 = sadd.s32 1, %s12
    $region7: #{tpu_custom_call.1} parent=1 // loop_footer_branch
      %11 = sbr.rel target = $region3
    $region8: #{tpu_custom_call.1} parent=1 // loop_exit
      _
    %491 = vsyncpa [#allocation8], 1
    %s492 = scalar_lea.sflag [#allocation8], 1
    %493 = vsyncpa %s492, 1

</llo_original>
